<compile_context>
chip_gen: v7x
topology: tpu7x:2x2x1
jax: 0.10.0
libtpu: 0.0.40
codegen_flags: <defaults>
</compile_context>

<pallas_src>
import functools

import jax
import jax.numpy as jnp
import numpy as np
from jax.experimental import pallas as pl
from jax.experimental.pallas import tpu as pltpu


# ----------------------------------------------------------------------------
# Kernel: vectorized over an (R, L) block of batch elements.
#   Dh  = (I + dt*J(x)) - A      (only 4 entries depend on x)
#   out = r - (2*sqrt(||ATP@Dh||_F^2) + ||P||_2 * ||Dh||_F^2)
# All constants are Python-float immediates; zero terms are skipped at trace
# time.
# ----------------------------------------------------------------------------
def quad_norm_kernel(x1_ref, x3_ref, out_ref, *,
                     dta1, dtb1, dta2, dtb2,
                     A10, A12, A30, A32,
                     const_dh_sq,
                     atpdh_const, L10, L12, L30, L32,
                     s11, s33, s13_2,
                     r, p_norm):
    x1 = x1_ref[...]
    x3 = x3_ref[...]

    # 3 transcendentals (cos is even: cos(x3-x1) == cos(x1-x3)).
    c1 = jnp.cos(x1)
    c3 = jnp.cos(x3)
    c13 = jnp.cos(x1 - x3)

    tb1 = dtb1 * c13                 # dt*b1*cos(x1-x3)
    tb2 = dtb2 * c13                 # dt*b2*cos(x1-x3)

    # The 4 x-dependent entries of Dh = (I + dt*J(x)) - A  (dt folded in).
    v10 = (-dta1) * c1 - tb1         # Dh[1,0] (before -A10)
    if A10 != 0.0:
        v10 = v10 - A10
    v12 = tb1 - A12 if A12 != 0.0 else tb1          # Dh[1,2]
    v30 = tb2 - A30 if A30 != 0.0 else tb2          # Dh[3,0]
    v32 = (-dta2) * c3 - tb2                        # Dh[3,2] (before -A32)
    if A32 != 0.0:
        v32 = v32 - A32

    # Grouped squares (reused by both norms).
    g0 = v10 * v10 + v12 * v12       # entries multiplied by ATP[:,1]
    g3 = v30 * v30 + v32 * v32       # entries multiplied by ATP[:,3]

    # ||Dh||_F^2 = constant part + variable squares
    dh_sq = g0 + g3
    if const_dh_sq != 0.0:
        dh_sq = dh_sq + const_dh_sq

    # ||ATP @ Dh||_F^2 as a quadratic form in (v10, v12, v30, v32):
    #   atpdh_const + L.v + s11*(v10^2+v12^2) + s33*(v30^2+v32^2)
    #               + 2*s13*(v10*v30 + v12*v32)
    cross = v10 * v30 + v12 * v32
    atpdh_sq = s11 * g0 + s33 * g3 + s13_2 * cross
    if L10 != 0.0:
        atpdh_sq = atpdh_sq + L10 * v10
    if L12 != 0.0:
        atpdh_sq = atpdh_sq + L12 * v12
    if L30 != 0.0:
        atpdh_sq = atpdh_sq + L30 * v30
    if L32 != 0.0:
        atpdh_sq = atpdh_sq + L32 * v32
    if atpdh_const != 0.0:
        atpdh_sq = atpdh_sq + atpdh_const

    # Mathematically >= 0 (sum of squares); clamp guards against tiny negative
    # rounding in the collapsed quadratic form before the EUP sqrt.
    atpdh_sq = jnp.maximum(atpdh_sq, 0.0)

    out_ref[...] = r - (2.0 * jnp.sqrt(atpdh_sq) + p_norm * dh_sq)


# ----------------------------------------------------------------------------
# Trace-time constant folding of the static module buffers (A, ATP, r, ||P||_2)
# and the dynamics parameters into quadratic-form coefficients (float64 on
# host, baked as Python floats).
# ----------------------------------------------------------------------------
def _prep_constants(A, ATP, r, P_norm, dt, a1, a2, b1, b2, D1, D2):
    A = np.asarray(A, dtype=np.float64)
    ATP = np.asarray(ATP, dtype=np.float64)

    # x-independent part of F = I + dt*J(x)
    Fc = np.zeros((4, 4), dtype=np.float64)
    Fc[0, 0] = 1.0
    Fc[0, 1] = dt
    Fc[1, 1] = 1.0 - dt * D1
    Fc[2, 2] = 1.0
    Fc[2, 3] = dt
    Fc[3, 3] = 1.0 - dt * D2
    Dhc = Fc - A                        # constant part of Dh (A kept general)

    var_idx = {(1, 0), (1, 2), (3, 0), (3, 2)}     # x-dependent Dh entries
    const_dh_sq = sum(Dhc[i, j] ** 2
                      for i in range(4) for j in range(4)
                      if (i, j) not in var_idx)

    # Columns 1 and 3 of Dh are fully constant -> constant columns of ATP@Dh.
    const_atpdh_sq = 0.0
    for j in (1, 3):
        col = ATP @ Dhc[:, j]
        const_atpdh_sq += float(col @ col)

    # Columns 0 and 2 of ATP@Dh:
    #   (ATP@Dh)[:,0] = C0 + P1*v10 + P3*v30,  (ATP@Dh)[:,2] = C2 + P1*v12 + P3*v32
    C0 = ATP[:, 0] * Dhc[0, 0] + ATP[:, 2] * Dhc[2, 0]
    C2 = ATP[:, 0] * Dhc[0, 2] + ATP[:, 2] * Dhc[2, 2]
    P1 = ATP[:, 1]
    P3 = ATP[:, 3]

    return dict(
        dta1=float(dt * a1), dtb1=float(dt * b1),
        dta2=float(dt * a2), dtb2=float(dt * b2),
        A10=float(A[1, 0]), A12=float(A[1, 2]),
        A30=float(A[3, 0]), A32=float(A[3, 2]),
        const_dh_sq=float(const_dh_sq),
        atpdh_const=float(const_atpdh_sq + C0 @ C0 + C2 @ C2),
        L10=float(2.0 * (C0 @ P1)), L30=float(2.0 * (C0 @ P3)),
        L12=float(2.0 * (C2 @ P1)), L32=float(2.0 * (C2 @ P3)),
        s11=float(P1 @ P1), s33=float(P3 @ P3), s13_2=float(2.0 * (P1 @ P3)),
        r=float(r), p_norm=float(P_norm),
    )


def quad_norm_forward(x, A, ATP, r, P_norm, dyn_params):
    """x: (B, 4) float32 -> (B, 1) float32, matching quad_norm.forward."""
    B = x.shape[0]

    # Sublane/lane-dense 2D packing of the batch.
    lanes = 128 if B <= 1024 else 512
    rows_needed = pl.cdiv(B, lanes)
    block_rows = max(8, min(512, ((rows_needed + 7) // 8) * 8))
    n_per_block = block_rows * lanes
    n_blocks = pl.cdiv(B, n_per_block)
    rows_total = n_blocks * block_rows
    total = rows_total * lanes

    # Only x1 and x3 are needed; pad and reshape to the (rows, lanes) slab.
    x1 = jnp.zeros((total,), x.dtype).at[:B].set(x[:, 0]).reshape(rows_total, lanes)
    x3 = jnp.zeros((total,), x.dtype).at[:B].set(x[:, 2]).reshape(rows_total, lanes)

    consts = _prep_constants(A, ATP, r, P_norm, **dyn_params)
    kernel = functools.partial(quad_norm_kernel, **consts)

    out = pl.pallas_call(
        kernel,
        out_shape=jax.ShapeDtypeStruct((rows_total, lanes), x.dtype),
        grid=(n_blocks,),
        in_specs=[
            pl.BlockSpec((block_rows, lanes), lambda i: (i, 0)),   # x1
            pl.BlockSpec((block_rows, lanes), lambda i: (i, 0)),   # x3
        ],
        out_specs=pl.BlockSpec((block_rows, lanes), lambda i: (i, 0)),
        compiler_params=pltpu.CompilerParams(
            dimension_semantics=("parallel",)),
    )(x1, x3)
    return out.reshape(-1)[:B].reshape(B, 1)


# ----------------------------------------------------------------------------
# Pure-JAX reference replicating the PyTorch module exactly (for verification).
# ----------------------------------------------------------------------------
def quad_norm_reference(x, A, ATP, r, P_norm, dt, a1, a2, b1, b2, D1, D2):
    x1 = x[:, 0]
    x3 = x[:, 2]
    z = jnp.zeros_like(x1)
    o = jnp.ones_like(x1)
    row0 = jnp.stack([z, o, z, z], axis=1)
    row1 = jnp.stack([-a1 * jnp.cos(x1) - b1 * jnp.cos(x1 - x3),
                      -D1 * o, b1 * jnp.cos(x1 - x3), z], axis=1)
    row2 = jnp.stack([z, z, z, o], axis=1)
    row3 = jnp.stack([b2 * jnp.cos(x3 - x1), z,
                      -a2 * jnp.cos(x3) - b2 * jnp.cos(x3 - x1), -D2 * o], axis=1)
    Ajac = jnp.stack([row0, row1, row2, row3], axis=1)          # (B,4,4)
    F = jnp.eye(4, dtype=x.dtype)[None] + dt * Ajac
    Dh = F - A[None]
    ATPDh = jnp.einsum('ik,bkj->bij', ATP, Dh)
    a_sq = jnp.sum(ATPDh * ATPDh, axis=(1, 2))
    d_sq = jnp.sum(Dh * Dh, axis=(1, 2))
    quad = 2.0 * jnp.sqrt(a_sq) + P_norm * d_sq
    return (r - quad)[:, None]


if __name__ == "__main__":
    # ---- dynamics parameters (module defaults) -----------------------------
    dyn_params = dict(dt=0.05, a1=1.0, a2=1.0, b1=0.5, b2=0.5, D1=0.4, D2=0.5)
    dt, a1, a2, b1, b2, D1, D2 = (dyn_params[k] for k in
                                  ("dt", "a1", "a2", "b1", "b2", "D1", "D2"))

    # ---- deterministic buffer setup (mirrors quad_norm.__init__) -----------
    key = jax.random.PRNGKey(0)
    k_p, k_x = jax.random.split(key)
    M = np.asarray(jax.random.normal(k_p, (4, 4), dtype=jnp.float32))
    P = (M @ M.T + 4.0 * np.eye(4)).astype(np.float32)          # SPD buffer P

    # A = linearization at the origin (cos terms = 1):  A = I + dt * J0
    J0 = np.array([[0.0, 1.0, 0.0, 0.0],
                   [-a1 - b1, -D1, b1, 0.0],
                   [0.0, 0.0, 0.0, 1.0],
                   [b2, 0.0, -a2 - b2, -D2]], dtype=np.float32)
    A = (np.eye(4, dtype=np.float32) + np.float32(dt) * J0).astype(np.float32)
    ATP = (A.T @ P).astype(np.float32)

    epsilon = 0.1
    Q = (A.T.astype(np.float64) @ P.astype(np.float64) @ A.astype(np.float64)
         - P.astype(np.float64))
    r = np.float32(np.max(np.abs(np.linalg.eigvals(Q))) - epsilon)
    P_norm = np.float32(np.linalg.norm(P, ord=2))

    # ---- example input ------------------------------------------------------
    B = 8
    x = jax.random.normal(k_x, (B, 4), dtype=jnp.float32)

    A_j = jnp.asarray(A)
    ATP_j = jnp.asarray(ATP)

    out = quad_norm_forward(x, A_j, ATP_j, r, P_norm, dyn_params)
    out = jax.block_until_ready(out)

    ref = quad_norm_reference(x, A_j, ATP_j, r, P_norm,
                              dt, a1, a2, b1, b2, D1, D2)
    np.testing.assert_allclose(np.asarray(out), np.asarray(ref),
                               rtol=1e-5, atol=1e-5)
    assert out.shape == (B, 1)
    print("KERNEL_OK")
</pallas_src>

<mosaic_0001>
module attributes {stable_mosaic.version = 11 : i64} {
  func.func @quad_norm_kernel(%arg0: i32, %arg1: memref<8x128xf32, #tpu.memory_space<vmem>>, %arg2: memref<8x128xf32, #tpu.memory_space<vmem>>, %arg3: memref<8x128xf32, #tpu.memory_space<vmem>>) attributes {dimension_semantics = [#tpu.dimension_semantics<parallel>], iteration_bounds = array<i64: 1>, scalar_prefetch = 0 : i64, scratch_operands = 0 : i64, tpu.core_type = #tpu.core_type<tc>, window_params = [{transform_indices = @transform_0, window_bounds = array<i64: 8, 128>}, {transform_indices = @transform_1, window_bounds = array<i64: 8, 128>}, {transform_indices = @transform_2, window_bounds = array<i64: 8, 128>}]} {
    %c0 = arith.constant 0 : index
    %c0_0 = arith.constant 0 : index
    %0 = vector.load %arg1[%c0, %c0_0] : memref<8x128xf32, #tpu.memory_space<vmem>>, vector<8x128xf32>
    %c0_1 = arith.constant 0 : index
    %c0_2 = arith.constant 0 : index
    %1 = vector.load %arg2[%c0_1, %c0_2] : memref<8x128xf32, #tpu.memory_space<vmem>>, vector<8x128xf32>
    %2 = math.cos %0 : vector<8x128xf32>
    %3 = math.cos %1 : vector<8x128xf32>
    %4 = arith.subf %0, %1 : vector<8x128xf32>
    %5 = math.cos %4 : vector<8x128xf32>
    %cst = arith.constant 2.500000e-02 : f32
    %6 = vector.broadcast %cst : f32 to vector<8x128xf32>
    %7 = arith.mulf %6, %5 : vector<8x128xf32>
    %cst_3 = arith.constant 2.500000e-02 : f32
    %8 = vector.broadcast %cst_3 : f32 to vector<8x128xf32>
    %9 = arith.mulf %8, %5 : vector<8x128xf32>
    %cst_4 = arith.constant -5.000000e-02 : f32
    %10 = vector.broadcast %cst_4 : f32 to vector<8x128xf32>
    %11 = arith.mulf %10, %2 : vector<8x128xf32>
    %12 = arith.subf %11, %7 : vector<8x128xf32>
    %cst_5 = arith.constant -7.500000e-02 : f32
    %13 = vector.broadcast %cst_5 : f32 to vector<8x128xf32>
    %14 = arith.subf %12, %13 : vector<8x128xf32>
    %cst_6 = arith.constant 2.500000e-02 : f32
    %15 = vector.broadcast %cst_6 : f32 to vector<8x128xf32>
    %16 = arith.subf %7, %15 : vector<8x128xf32>
    %cst_7 = arith.constant 2.500000e-02 : f32
    %17 = vector.broadcast %cst_7 : f32 to vector<8x128xf32>
    %18 = arith.subf %9, %17 : vector<8x128xf32>
    %cst_8 = arith.constant -5.000000e-02 : f32
    %19 = vector.broadcast %cst_8 : f32 to vector<8x128xf32>
    %20 = arith.mulf %19, %3 : vector<8x128xf32>
    %21 = arith.subf %20, %9 : vector<8x128xf32>
    %cst_9 = arith.constant -7.500000e-02 : f32
    %22 = vector.broadcast %cst_9 : f32 to vector<8x128xf32>
    %23 = arith.subf %21, %22 : vector<8x128xf32>
    %24 = arith.mulf %14, %14 : vector<8x128xf32>
    %25 = arith.mulf %16, %16 : vector<8x128xf32>
    %26 = arith.addf %24, %25 : vector<8x128xf32>
    %27 = arith.mulf %18, %18 : vector<8x128xf32>
    %28 = arith.mulf %23, %23 : vector<8x128xf32>
    %29 = arith.addf %27, %28 : vector<8x128xf32>
    %30 = arith.addf %26, %29 : vector<8x128xf32>
    %cst_10 = arith.constant 9.33342322E-16 : f32
    %31 = vector.broadcast %cst_10 : f32 to vector<8x128xf32>
    %32 = arith.addf %30, %31 : vector<8x128xf32>
    %33 = arith.mulf %14, %18 : vector<8x128xf32>
    %34 = arith.mulf %16, %23 : vector<8x128xf32>
    %35 = arith.addf %33, %34 : vector<8x128xf32>
    %cst_11 = arith.constant 59.5997353 : f32
    %36 = vector.broadcast %cst_11 : f32 to vector<8x128xf32>
    %37 = arith.mulf %36, %26 : vector<8x128xf32>
    %cst_12 = arith.constant 107.556358 : f32
    %38 = vector.broadcast %cst_12 : f32 to vector<8x128xf32>
    %39 = arith.mulf %38, %29 : vector<8x128xf32>
    %40 = arith.addf %37, %39 : vector<8x128xf32>
    %cst_13 = arith.constant 94.246994 : f32
    %41 = vector.broadcast %cst_13 : f32 to vector<8x128xf32>
    %42 = arith.mulf %41, %35 : vector<8x128xf32>
    %43 = arith.addf %40, %42 : vector<8x128xf32>
    %cst_14 = arith.constant 7.7992727E-14 : f32
    %44 = vector.broadcast %cst_14 : f32 to vector<8x128xf32>
    %45 = arith.addf %43, %44 : vector<8x128xf32>
    %cst_15 = arith.constant 0.000000e+00 : f32
    %46 = vector.broadcast %cst_15 : f32 to vector<8x128xf32>
    %47 = arith.maximumf %45, %46 : vector<8x128xf32>
    %48 = math.sqrt %47 : vector<8x128xf32>
    %cst_16 = arith.constant 2.000000e+00 : f32
    %49 = vector.broadcast %cst_16 : f32 to vector<8x128xf32>
    %50 = arith.mulf %49, %48 : vector<8x128xf32>
    %cst_17 = arith.constant 19.212822 : f32
    %51 = vector.broadcast %cst_17 : f32 to vector<8x128xf32>
    %52 = arith.mulf %51, %32 : vector<8x128xf32>
    %53 = arith.addf %50, %52 : vector<8x128xf32>
    %cst_18 = arith.constant 1.06929433 : f32
    %54 = vector.broadcast %cst_18 : f32 to vector<8x128xf32>
    %55 = arith.subf %54, %53 : vector<8x128xf32>
    %c0_19 = arith.constant 0 : index
    %c0_20 = arith.constant 0 : index
    %56 = vector.load %arg3[%c0_19, %c0_20] : memref<8x128xf32, #tpu.memory_space<vmem>>, vector<8x128xf32>
    tpu.vector_store %arg3[%c0_19, %c0_20], %55 {strides = array<i32>} : memref<8x128xf32, #tpu.memory_space<vmem>>, vector<8x128xf32>,
    return
  }
  func.func @transform_0(%arg0: i32) -> (i32, i32) {
    %c0_i32 = arith.constant 0 : i32
    %c0_i32_0 = arith.constant 0 : i32
    return %arg0, %c0_i32 : i32, i32
  }
  func.func @transform_1(%arg0: i32) -> (i32, i32) {
    %c0_i32 = arith.constant 0 : i32
    %c0_i32_0 = arith.constant 0 : i32
    return %arg0, %c0_i32 : i32, i32
  }
  func.func @transform_2(%arg0: i32) -> (i32, i32) {
    %c0_i32 = arith.constant 0 : i32
    %c0_i32_0 = arith.constant 0 : i32
    return %arg0, %c0_i32 : i32, i32
  }
}

</mosaic_0001>

<llo_original>
// kernel: tpu_custom_call.1
$region0: #{tpu_custom_call.1}
  #allocation0 [shape = 'u32[]', space=smem, size = 0x4, offset = 0x4, fixed_abs, tag = 'smem constant byte address 0x4 - core index']
  #allocation1 [shape = 'u32[144,128]{1,0:T(1,128)}', space=vmem, size = 0x12000, scoped, tag = 'internal scratch']
  %s0 = inlined_call_operand.hbm [shape: f32[8,128], index: 0, kind: input, shape index: {}]
  %s1 = inlined_call_operand.hbm [shape: f32[8,128], index: 1, kind: input, shape index: {}]
  %s2 = inlined_call_operand.hbm [shape: f32[8,128], index: 2, kind: output, shape index: {}]
  %s3 = sld [smem:[#allocation0]]
  $region26: #{tpu_custom_call.1} parent=0
    _
  %s5 = ssub.s32 1, %s3
  %s6 = scalar_select 0, %s5, %s3
  $region1: #{tpu_custom_call.1} parent=0
    #allocation2 [shape = 'u8[4096]{0}', space=vmem, size = 0x1000, scoped, tag = 'input window, operand 0, single buffered']
    #allocation3 [shape = 's32[1]{0}', space=sflag, size = 0x4, scoped, tag = 'scoped memory for tpu_custom_call.1']
    #allocation4 [shape = 's32[1]{0}', space=sflag, size = 0x4, scoped, tag = 'scoped memory for tpu_custom_call.1']
    #allocation5 [shape = 'u8[4096]{0}', space=vmem, size = 0x1000, scoped, tag = 'input window, operand 1, single buffered']
    #allocation6 [shape = 's32[1]{0}', space=sflag, size = 0x4, scoped, tag = 'scoped memory for tpu_custom_call.1']
    #allocation7 [shape = 'u8[4096]{0}', space=vmem, size = 0x1000, scoped, tag = 'output window, operand 0, single buffered']
    %7 = vsyncpa [#allocation3], 0
    %8 = vsyncpa [#allocation6], 0
    %9 = vsyncpa [#allocation4], 0
    // Predicated region
    $region2: #{tpu_custom_call.1} parent=1 // pred_check
      _
    $region3: #{tpu_custom_call.1} parent=1 // pred_check_branch
      %11 = sbr.rel (0) target = $region5
    $region4: #{tpu_custom_call.1} parent=1 // pred_region
      %s13 = ssub.s32 128, 128
      %14 = vsyncadd [#allocation3], %s13
      %s16 = sshll.u32 [#allocation2], 4
      %s17 = int_to_ptr.vmem [resolvable:$true] %s16
      %19 = dma.hbm_to_vmem [thread:$0]  %s0, 128, %s17, [#allocation3]
    $region5: #{tpu_custom_call.1} parent=1 // pred_fallthru
      _
    // Predicated region
    $region6: #{tpu_custom_call.1} parent=1 // pred_check
      _
    $region7: #{tpu_custom_call.1} parent=1 // pred_check_branch
      %21 = sbr.rel (0) target = $region9
    $region8: #{tpu_custom_call.1} parent=1 // pred_region
      %s23 = ssub.s32 128, 128
      %24 = vsyncadd [#allocation6], %s23
      %s26 = sshll.u32 [#allocation5], 4
      %s27 = int_to_ptr.vmem [resolvable:$true] %s26
      %29 = dma.hbm_to_vmem [thread:$0]  %s1, 128, %s27, [#allocation6]
    $region9: #{tpu_custom_call.1} parent=1 // pred_fallthru
      _
    // Predicated region
    $region10: #{tpu_custom_call.1} parent=1 // pred_check
      _
    $region11: #{tpu_custom_call.1} parent=1 // pred_check_branch
      %31 = sbr.rel (0) target = $region13
    $region12: #{tpu_custom_call.1} parent=1 // pred_region
      %32 = dma.done [#allocation3], 128
    $region13: #{tpu_custom_call.1} parent=1 // pred_fallthru
      _
    // Predicated region
    $region14: #{tpu_custom_call.1} parent=1 // pred_check
      _
    $region15: #{tpu_custom_call.1} parent=1 // pred_check_branch
      %34 = sbr.rel (0) target = $region17
    $region16: #{tpu_custom_call.1} parent=1 // pred_region
      %35 = dma.done [#allocation6], 128
    $region17: #{tpu_custom_call.1} parent=1 // pred_fallthru
      _
    %v36 = vld [vmem:[#allocation2] sm:$0xff]
    %v37 = vld [vmem:[#allocation5] sm:$0xff]
    %v38 = vand.u32 2147483647, %v36
    %vm39 = vcmp.le.f32.partialorder %v38, 0.7853982
    %vm40 = vcmp.lt.s32.totalorder %v36, 0
    %v41 = vand.u32 %v36, 2139095040
    %v42 = vshrl.u32 %v41, 23
    %v43 = vsub.s32 %v42, 127
    %v44 = vand.u32 2147483647, %v36
    %v45 = vand.u32 %v44, 8388607
    %v46 = vor.u32 %v45, 8388608
    %v47 = vsub.s32 0, %v46
    %v48 = vadd.s32 %v43, 1
    %vm49 = vcmp.gt.s32.totalorder %v48, 0
    %v50 = vsel %vm49, %v48, 0
    %v51 = vshrl.u32 %v50, 5
    %v52 = vand.u32 %v50, 31
    %v53 = vsub.s32 32, %v52
    %v54 = vshrl.u32 683565275, %v53
    %v55 = vshll.u32 683565275, %v52
    %v56 = vshrl.u32 2475754826, %v53
    %v57 = vor.u32 %v55, %v56
    %v58 = vshll.u32 2475754826, %v52
    %v59 = vshrl.u32 2131351028, %v53
    %v60 = vor.u32 %v58, %v59
    %v61 = vshll.u32 2131351028, %v52
    %v62 = vshrl.u32 2102212464, %v53
    %v63 = vor.u32 %v61, %v62
    %v64 = vshll.u32 2102212464, %v52
    %v65 = vshrl.u32 920167782, %v53
    %v66 = vor.u32 %v64, %v65
    %v67 = vshll.u32 920167782, %v52
    %v68 = vshrl.u32 1326507024, %v53
    %v69 = vor.u32 %v67, %v68
    %vm70 = vcmp.lt.s32.totalorder %v51, 1
    %vm71 = vcmp.lt.s32.totalorder %v51, 2
    %vm72 = vcmp.lt.s32.totalorder %v51, 3
    %vm73 = vcmp.lt.s32.totalorder %v51, 4
    %v74 = vsel %vm70, %v54, %v57
    %v75 = vsel %vm73, %v63, 2102212464
    %v76 = vsel %vm72, %v60, %v75
    %v77 = vsel %vm71, %v74, %v76
    %v78 = vsel %vm70, %v57, %v60
    %v79 = vsel %vm73, %v66, 920167782
    %v80 = vsel %vm72, %v63, %v79
    %v81 = vsel %vm71, %v78, %v80
    %v82 = vsel %vm70, %v60, %v63
    %v83 = vsel %vm73, %v69, 1326507024
    %v84 = vsel %vm72, %v66, %v83
    %v85 = vsel %vm71, %v82, %v84
    %v86 = vshll.u32 %v46, 8
    %v87 = vmul.u32.u64.compose %v86, %v85
    %v88 = vextract.low.u32 %v87
    %v89 = vextract.high.u32 %v87
    %v90 = vmul.u32.u64.compose %v86, %v81
    %v91 = vextract.low.u32 %v90
    %v92 = vextract.high.u32 %v90
    %v93 = vmul.u32 %v86, %v77
    %v94 = vadd.s32 %v89, %v91
    %vm95 = vc.u32 %v89, %v91
    %v96 = vadd.s32 %v92, 1
    %v97 = vsel %vm95, %v96, %v92
    %v98 = vadd.s32 %v93, %v97
    %v99 = vadd.s32 %v98, 536870912
    %v100 = vshrl.u32 %v99, 30
    %v101 = vshll.u32 %v100, 30
    %v102 = vsub.s32 %v98, %v101
    %vm103 = vcmp.lt.s32.totalorder %v102, 0
    %v104 = vsub.s32 0, %v102
    %v105 = vsel %vm103, %v104, %v102
    %v106 = vclz %v105
    %v107 = vsub.s32 %v106, 2
    %vm108 = vcmp.gt.s32.totalorder 0, %v107
    %v109 = vsel %vm108, 0, %v107
    %v110 = vsub.s32 32, %v109
    %v111 = vshll.u32 %v102, %v109
    %v112 = vshrl.u32 %v94, %v110
    %v113 = vor.u32 %v111, %v112
    %v114 = vsub.s32 4294967266, %v109
    %v115 = vadd.s32 %v114, 127
    %v116 = vshll.u32 %v115, 23
    %v117 = vor.u32 4788187, %v116
    %v118 = vand.u32 2147483647, %v117
    %v120 = vcvt.s32.f32 %v113
    %v121 = vmul.f32 %v120, %v118
    %v122 = vxor.u32 %v121, 2147483648
    %v123 = vsel %vm40, %v122, %v121
    %v124 = vsub.s32 4, %v100
    %v125 = vsel %vm40, %v124, %v100
    %v126 = vsel %vm39, %v36, %v123
    %v127 = vsel %vm39, 0, %v125
    %v128 = vcosq.f32.pop %v126
    %v129 = vsinq.f32.pop %v126
    %vm130 = vweird.f32 %v36
    %v131 = vand.u32 %v127, 3
    %vm132 = vcmp.lt.s32.totalorder %v131, 2
    %vm133 = vcmp.eq.s32.totalorder %v131, 0
    %v134 = vxor.u32 %v129, 2147483648
    %v135 = vsel %vm133, %v128, %v134
    %vm136 = vcmp.eq.s32.totalorder %v131, 2
    %v137 = vxor.u32 %v128, 2147483648
    %v138 = vsel %vm136, %v137, %v129
    %v139 = vsel %vm132, %v135, %v138
    %v140 = vsel %vm130, nan, %v139
    %v141 = vand.u32 2147483647, %v37
    %vm142 = vcmp.le.f32.partialorder %v141, 0.7853982
    %vm143 = vcmp.lt.s32.totalorder %v37, 0
    %v144 = vand.u32 %v37, 2139095040
    %v145 = vshrl.u32 %v144, 23
    %v146 = vsub.s32 %v145, 127
    %v147 = vand.u32 2147483647, %v37
    %v148 = vand.u32 %v147, 8388607
    %v149 = vor.u32 %v148, 8388608
    %v150 = vsub.s32 0, %v149
    %v151 = vadd.s32 %v146, 1
    %vm152 = vcmp.gt.s32.totalorder %v151, 0
    %v153 = vsel %vm152, %v151, 0
    %v154 = vshrl.u32 %v153, 5
    %v155 = vand.u32 %v153, 31
    %v156 = vsub.s32 32, %v155
    %v157 = vshrl.u32 683565275, %v156
    %v158 = vshll.u32 683565275, %v155
    %v159 = vshrl.u32 2475754826, %v156
    %v160 = vor.u32 %v158, %v159
    %v161 = vshll.u32 2475754826, %v155
    %v162 = vshrl.u32 2131351028, %v156
    %v163 = vor.u32 %v161, %v162
    %v164 = vshll.u32 2131351028, %v155
    %v165 = vshrl.u32 2102212464, %v156
    %v166 = vor.u32 %v164, %v165
    %v167 = vshll.u32 2102212464, %v155
    %v168 = vshrl.u32 920167782, %v156
    %v169 = vor.u32 %v167, %v168
    %v170 = vshll.u32 920167782, %v155
    %v171 = vshrl.u32 1326507024, %v156
    %v172 = vor.u32 %v170, %v171
    %vm173 = vcmp.lt.s32.totalorder %v154, 1
    %vm174 = vcmp.lt.s32.totalorder %v154, 2
    %vm175 = vcmp.lt.s32.totalorder %v154, 3
    %vm176 = vcmp.lt.s32.totalorder %v154, 4
    %v177 = vsel %vm173, %v157, %v160
    %v178 = vsel %vm176, %v166, 2102212464
    %v179 = vsel %vm175, %v163, %v178
    %v180 = vsel %vm174, %v177, %v179
    %v181 = vsel %vm173, %v160, %v163
    %v182 = vsel %vm176, %v169, 920167782
    %v183 = vsel %vm175, %v166, %v182
    %v184 = vsel %vm174, %v181, %v183
    %v185 = vsel %vm173, %v163, %v166
    %v186 = vsel %vm176, %v172, 1326507024
    %v187 = vsel %vm175, %v169, %v186
    %v188 = vsel %vm174, %v185, %v187
    %v189 = vshll.u32 %v149, 8
    %v190 = vmul.u32.u64.compose %v189, %v188
    %v191 = vextract.low.u32 %v190
    %v192 = vextract.high.u32 %v190
    %v193 = vmul.u32.u64.compose %v189, %v184
    %v194 = vextract.low.u32 %v193
    %v195 = vextract.high.u32 %v193
    %v196 = vmul.u32 %v189, %v180
    %v197 = vadd.s32 %v192, %v194
    %vm198 = vc.u32 %v192, %v194
    %v199 = vadd.s32 %v195, 1
    %v200 = vsel %vm198, %v199, %v195
    %v201 = vadd.s32 %v196, %v200
    %v202 = vadd.s32 %v201, 536870912
    %v203 = vshrl.u32 %v202, 30
    %v204 = vshll.u32 %v203, 30
    %v205 = vsub.s32 %v201, %v204
    %vm206 = vcmp.lt.s32.totalorder %v205, 0
    %v207 = vsub.s32 0, %v205
    %v208 = vsel %vm206, %v207, %v205
    %v209 = vclz %v208
    %v210 = vsub.s32 %v209, 2
    %vm211 = vcmp.gt.s32.totalorder 0, %v210
    %v212 = vsel %vm211, 0, %v210
    %v213 = vsub.s32 32, %v212
    %v214 = vshll.u32 %v205, %v212
    %v215 = vshrl.u32 %v197, %v213
    %v216 = vor.u32 %v214, %v215
    %v217 = vsub.s32 4294967266, %v212
    %v218 = vadd.s32 %v217, 127
    %v219 = vshll.u32 %v218, 23
    %v220 = vor.u32 4788187, %v219
    %v221 = vand.u32 2147483647, %v220
    %v223 = vcvt.s32.f32 %v216
    %v224 = vmul.f32 %v223, %v221
    %v225 = vxor.u32 %v224, 2147483648
    %v226 = vsel %vm143, %v225, %v224
    %v227 = vsub.s32 4, %v203
    %v228 = vsel %vm143, %v227, %v203
    %v229 = vsel %vm142, %v37, %v226
    %v230 = vsel %vm142, 0, %v228
    %v231 = vcosq.f32.pop %v229
    %v232 = vsinq.f32.pop %v229
    %vm233 = vweird.f32 %v37
    %v234 = vand.u32 %v230, 3
    %vm235 = vcmp.lt.s32.totalorder %v234, 2
    %vm236 = vcmp.eq.s32.totalorder %v234, 0
    %v237 = vxor.u32 %v232, 2147483648
    %v238 = vsel %vm236, %v231, %v237
    %vm239 = vcmp.eq.s32.totalorder %v234, 2
    %v240 = vxor.u32 %v231, 2147483648
    %v241 = vsel %vm239, %v240, %v232
    %v242 = vsel %vm235, %v238, %v241
    %v243 = vsel %vm233, nan, %v242
    %v244 = vsub.f32 %v36, %v37
    %v245 = vand.u32 2147483647, %v244
    %vm246 = vcmp.le.f32.partialorder %v245, 0.7853982
    %vm247 = vcmp.lt.s32.totalorder %v244, 0
    %v248 = vand.u32 %v244, 2139095040
    %v249 = vshrl.u32 %v248, 23
    %v250 = vsub.s32 %v249, 127
    %v251 = vand.u32 2147483647, %v244
    %v252 = vand.u32 %v251, 8388607
    %v253 = vor.u32 %v252, 8388608
    %v254 = vsub.s32 0, %v253
    %v255 = vadd.s32 %v250, 1
    %vm256 = vcmp.gt.s32.totalorder %v255, 0
    %v257 = vsel %vm256, %v255, 0
    %v258 = vshrl.u32 %v257, 5
    %v259 = vand.u32 %v257, 31
    %v260 = vsub.s32 32, %v259
    %v261 = vshrl.u32 683565275, %v260
    %v262 = vshll.u32 683565275, %v259
    %v263 = vshrl.u32 2475754826, %v260
    %v264 = vor.u32 %v262, %v263
    %v265 = vshll.u32 2475754826, %v259
    %v266 = vshrl.u32 2131351028, %v260
    %v267 = vor.u32 %v265, %v266
    %v268 = vshll.u32 2131351028, %v259
    %v269 = vshrl.u32 2102212464, %v260
    %v270 = vor.u32 %v268, %v269
    %v271 = vshll.u32 2102212464, %v259
    %v272 = vshrl.u32 920167782, %v260
    %v273 = vor.u32 %v271, %v272
    %v274 = vshll.u32 920167782, %v259
    %v275 = vshrl.u32 1326507024, %v260
    %v276 = vor.u32 %v274, %v275
    %vm277 = vcmp.lt.s32.totalorder %v258, 1
    %vm278 = vcmp.lt.s32.totalorder %v258, 2
    %vm279 = vcmp.lt.s32.totalorder %v258, 3
    %vm280 = vcmp.lt.s32.totalorder %v258, 4
    %v281 = vsel %vm277, %v261, %v264
    %v282 = vsel %vm280, %v270, 2102212464
    %v283 = vsel %vm279, %v267, %v282
    %v284 = vsel %vm278, %v281, %v283
    %v285 = vsel %vm277, %v264, %v267
    %v286 = vsel %vm280, %v273, 920167782
    %v287 = vsel %vm279, %v270, %v286
    %v288 = vsel %vm278, %v285, %v287
    %v289 = vsel %vm277, %v267, %v270
    %v290 = vsel %vm280, %v276, 1326507024
    %v291 = vsel %vm279, %v273, %v290
    %v292 = vsel %vm278, %v289, %v291
    %v293 = vshll.u32 %v253, 8
    %v294 = vmul.u32.u64.compose %v293, %v292
    %v295 = vextract.low.u32 %v294
    %v296 = vextract.high.u32 %v294
    %v297 = vmul.u32.u64.compose %v293, %v288
    %v298 = vextract.low.u32 %v297
    %v299 = vextract.high.u32 %v297
    %v300 = vmul.u32 %v293, %v284
    %v301 = vadd.s32 %v296, %v298
    %vm302 = vc.u32 %v296, %v298
    %v303 = vadd.s32 %v299, 1
    %v304 = vsel %vm302, %v303, %v299
    %v305 = vadd.s32 %v300, %v304
    %v306 = vadd.s32 %v305, 536870912
    %v307 = vshrl.u32 %v306, 30
    %v308 = vshll.u32 %v307, 30
    %v309 = vsub.s32 %v305, %v308
    %vm310 = vcmp.lt.s32.totalorder %v309, 0
    %v311 = vsub.s32 0, %v309
    %v312 = vsel %vm310, %v311, %v309
    %v313 = vclz %v312
    %v314 = vsub.s32 %v313, 2
    %vm315 = vcmp.gt.s32.totalorder 0, %v314
    %v316 = vsel %vm315, 0, %v314
    %v317 = vsub.s32 32, %v316
    %v318 = vshll.u32 %v309, %v316
    %v319 = vshrl.u32 %v301, %v317
    %v320 = vor.u32 %v318, %v319
    %v321 = vsub.s32 4294967266, %v316
    %v322 = vadd.s32 %v321, 127
    %v323 = vshll.u32 %v322, 23
    %v324 = vor.u32 4788187, %v323
    %v325 = vand.u32 2147483647, %v324
    %v327 = vcvt.s32.f32 %v320
    %v328 = vmul.f32 %v327, %v325
    %v329 = vxor.u32 %v328, 2147483648
    %v330 = vsel %vm247, %v329, %v328
    %v331 = vsub.s32 4, %v307
    %v332 = vsel %vm247, %v331, %v307
    %v333 = vsel %vm246, %v244, %v330
    %v334 = vsel %vm246, 0, %v332
    %v335 = vcosq.f32.pop %v333
    %v336 = vsinq.f32.pop %v333
    %vm337 = vweird.f32 %v244
    %v338 = vand.u32 %v334, 3
    %vm339 = vcmp.lt.s32.totalorder %v338, 2
    %vm340 = vcmp.eq.s32.totalorder %v338, 0
    %v341 = vxor.u32 %v336, 2147483648
    %v342 = vsel %vm340, %v335, %v341
    %vm343 = vcmp.eq.s32.totalorder %v338, 2
    %v344 = vxor.u32 %v335, 2147483648
    %v345 = vsel %vm343, %v344, %v336
    %v346 = vsel %vm339, %v342, %v345
    %v347 = vsel %vm337, nan, %v346
    %v348 = vmul.f32 %v347, 0.025
    %v349 = vmul.f32 %v140, -0.05
    %v350 = vsub.f32 %v349, %v348
    %v351 = vsub.f32 %v350, -0.075
    %v352 = vsub.f32 %v348, 0.025
    %v353 = vmul.f32 %v243, -0.05
    %v354 = vsub.f32 %v353, %v348
    %v355 = vsub.f32 %v354, -0.075
    %v356 = vmul.f32 %v351, %v351
    %v357 = vmul.f32 %v352, %v352
    %v358 = vadd.f32 %v356, %v357
    %v359 = vmul.f32 %v355, %v355
    %v360 = vadd.f32 %v357, %v359
    %v361 = vadd.f32 %v358, %v360
    %v362 = vadd.f32 %v361, 9.333423e-16
    %v363 = vmul.f32 %v351, %v352
    %v364 = vmul.f32 %v352, %v355
    %v365 = vadd.f32 %v363, %v364
    %v366 = vmul.f32 %v358, 59.599735
    %v367 = vmul.f32 %v360, 107.55636
    %v368 = vadd.f32 %v366, %v367
    %v369 = vmul.f32 %v365, 94.246994
    %v370 = vadd.f32 %v368, %v369
    %v371 = vadd.f32 %v370, 7.799273e-14
    %v372 = vmax.f32 %v371, 0.0
    %v373 = vrsqrt.pop %v372
    %v374 = vmul.f32 %v372, %v373
    %vm375 = vcmp.eq.f32.partialorder %v372, inf
    %v376 = vsel %vm375, %v372, %v374
    %vm377 = vcmp.eq.f32.partialorder %v372, 0.0
    %v378 = vand.u32 %v372, 2147483648
    %v379 = vsel %vm377, %v378, %v376
    %v380 = vmul.f32 %v379, 2.0
    %v381 = vmul.f32 %v362, 19.212822
    %v382 = vadd.f32 %v380, %v381
    %v383 = vsub.f32 1.0692943, %v382
    %384 = vst [vmem:[#allocation7] sm:$0xff] %v383
    // Predicated region
    $region18: #{tpu_custom_call.1} parent=1 // pred_check
      _
    $region19: #{tpu_custom_call.1} parent=1 // pred_check_branch
      %386 = sbr.rel (0) target = $region21
    $region20: #{tpu_custom_call.1} parent=1 // pred_region
      %s388 = ssub.s32 128, 128
      %389 = vsyncadd [#allocation4], %s388
      %s391 = sshll.u32 [#allocation7], 4
      %s392 = int_to_ptr.vmem [resolvable:$true] %s391
      %394 = dma.vmem_to_hbm [thread:$0]  %s392, 128, %s2, [#allocation4]
    $region21: #{tpu_custom_call.1} parent=1 // pred_fallthru
      _
    // Predicated region
    $region22: #{tpu_custom_call.1} parent=1 // pred_check
      _
    $region23: #{tpu_custom_call.1} parent=1 // pred_check_branch
      %396 = sbr.rel (0) target = $region25
    $region24: #{tpu_custom_call.1} parent=1 // pred_region
      %397 = dma.done [#allocation4], 128
    $region25: #{tpu_custom_call.1} parent=1 // pred_fallthru
      _
    %398 = vsyncpa [#allocation3], 1
    %399 = vsyncpa [#allocation6], 1
    %400 = vsyncpa [#allocation4], 1

</llo_original>
